<compile_context>
chip_gen: v7x
topology: tpu7x:2x2x1
jax: 0.10.0
libtpu: 0.0.40
codegen_flags: <defaults>
</compile_context>

<pallas_src>
import math

import jax
import jax.numpy as jnp
from jax import lax
from jax.experimental import pallas as pl
from jax.experimental.pallas import tpu as pltpu


def _round_up(x, m):
    return ((x + m - 1) // m) * m


def mlp_kernel(x_ref, w1_ref, b1_ref, w2_ref, b2_ref, o_ref):
    # x_ref:  (tm, Dp)   bf16 token tile (resident across the H axis)
    # w1_ref: (Dp, th)   bf16 c_fc weight column-tile
    # b1_ref: (1, th)    f32  c_fc bias tile
    # w2_ref: (th, Dp)   bf16 c_proj weight row-tile
    # b2_ref: (1, Dp)    f32  c_proj bias (whole)
    # o_ref:  (tm, Dp)   f32  output tile; resident across the H axis and used
    #                         directly as the c_proj accumulator.
    h_idx = pl.program_id(1)

    @pl.when(h_idx == 0)
    def _():
        # Seed the resident output block with the c_proj bias (added once).
        o_ref[...] = jnp.broadcast_to(b2_ref[...], o_ref.shape)

    # c_fc partial: x @ W1[:, h-tile] + b1[h-tile]   (MXU bf16 -> f32 acc)
    h = jnp.dot(x_ref[...], w1_ref[...], preferred_element_type=jnp.float32)
    h = h + b1_ref[...]

    # exact GELU: 0.5 * h * (1 + erf(h / sqrt(2)))   (f32, EUP/VPU)
    inv_sqrt2 = jnp.float32(1.0 / math.sqrt(2.0))
    h = 0.5 * h * (1.0 + lax.erf(h * inv_sqrt2))

    # c_proj partial: accumulate gelu(h) @ W2[h-tile, :] into the output block.
    o_ref[...] += jnp.dot(h.astype(w2_ref.dtype), w2_ref[...],
                          preferred_element_type=jnp.float32)

    # dropout: identity in eval mode (no-op).
    # TODO(synk): training-mode dropout would need pltpu.prng_seed/random_bits.


def mlp_pallas(x2d, w1, b1, w2, b2, *, tm=256, th=512):
    """x2d: (M, D) f32;  w1: (D, H); b1: (H,); w2: (H, D); b2: (D,)."""
    M, D = x2d.shape
    H = w1.shape[1]

    # Lane-dense / tile-friendly padded shapes.
    D_pad = _round_up(D, 128)
    tm = min(tm, _round_up(M, 8))          # sublane-aligned row tile
    th = min(th, _round_up(H, 128))        # lane-aligned hidden tile
    M_pad = _round_up(M, tm)
    H_pad = _round_up(_round_up(H, 128), th)

    # Zero-pad (padded hidden units see b1 = 0 -> gelu(0) = 0 -> contribute 0).
    x_p = jnp.pad(x2d.astype(jnp.bfloat16), ((0, M_pad - M), (0, D_pad - D)))
    w1_p = jnp.pad(w1.astype(jnp.bfloat16), ((0, D_pad - D), (0, H_pad - H)))
    b1_p = jnp.pad(b1.astype(jnp.float32), (0, H_pad - H)).reshape(1, H_pad)
    w2_p = jnp.pad(w2.astype(jnp.bfloat16), ((0, H_pad - H), (0, D_pad - D)))
    b2_p = jnp.pad(b2.astype(jnp.float32), (0, D_pad - D)).reshape(1, D_pad)

    grid = (M_pad // tm, H_pad // th)

    flops = 4 * M_pad * D_pad * H_pad            # two matmuls
    transcendentals = M_pad * H_pad              # erf on the hidden tensor
    bytes_accessed = (
        x_p.size * x_p.dtype.itemsize
        + w1_p.size * w1_p.dtype.itemsize * grid[0]   # weights re-streamed per row tile
        + w2_p.size * w2_p.dtype.itemsize * grid[0]
        + b1_p.size * b1_p.dtype.itemsize
        + b2_p.size * b2_p.dtype.itemsize
        + M_pad * D_pad * 4                      # f32 output
    )

    y_pad = pl.pallas_call(
        mlp_kernel,
        out_shape=jax.ShapeDtypeStruct((M_pad, D_pad), jnp.float32),
        grid_spec=pltpu.PrefetchScalarGridSpec(
            num_scalar_prefetch=0,
            grid=grid,
            in_specs=[
                pl.BlockSpec((tm, D_pad), lambda i, h: (i, 0)),   # x tile
                pl.BlockSpec((D_pad, th), lambda i, h: (0, h)),   # W1 col-tile
                pl.BlockSpec((1, th),     lambda i, h: (0, h)),   # b1 tile
                pl.BlockSpec((th, D_pad), lambda i, h: (h, 0)),   # W2 row-tile
                pl.BlockSpec((1, D_pad),  lambda i, h: (0, 0)),   # b2
            ],
            out_specs=pl.BlockSpec((tm, D_pad), lambda i, h: (i, 0)),
        ),
        compiler_params=pltpu.CompilerParams(
            dimension_semantics=("parallel", "arbitrary")),
        cost_estimate=pl.CostEstimate(
            flops=int(flops),
            transcendentals=int(transcendentals),
            bytes_accessed=int(bytes_accessed)),
    )(x_p, w1_p, b1_p, w2_p, b2_p)

    return y_pad[:M, :D]


def mlp_forward(x, params):
    """x: (B, T, n_embd). Returns (B, T, n_embd) f32."""
    B, T, D = x.shape
    x2d = x.reshape(B * T, D)
    y2d = mlp_pallas(x2d, params["w1"], params["b1"],
                     params["w2"], params["b2"])
    return y2d.reshape(B, T, D)


def init_params(key, n_embd):
    """Deterministic params mimicking nn.Linear shapes (bias=True)."""
    h = 4 * n_embd
    k1, k2, k3, k4 = jax.random.split(key, 4)
    # nn.Linear(in, out).weight is (out, in); store transposed (in, out).
    bound1 = 1.0 / math.sqrt(n_embd)
    bound2 = 1.0 / math.sqrt(h)
    w1 = jax.random.uniform(k1, (n_embd, h), jnp.float32, -bound1, bound1)
    b1 = jax.random.uniform(k2, (h,), jnp.float32, -bound1, bound1)
    w2 = jax.random.uniform(k3, (h, n_embd), jnp.float32, -bound2, bound2)
    b2 = jax.random.uniform(k4, (n_embd,), jnp.float32, -bound2, bound2)
    return {"w1": w1, "b1": b1, "w2": w2, "b2": b2}


if __name__ == "__main__":
    # config: n_embd=32, bias=True, dropout=0.0 (eval-mode identity)
    B, T, n_embd = 2, 8, 32
    key = jax.random.PRNGKey(0)
    kx, kp = jax.random.split(key)

    x = jax.random.normal(kx, (B, T, n_embd), jnp.float32)
    params = init_params(kp, n_embd)

    y = mlp_forward(x, params)
    jax.block_until_ready(y)

    # Reference 1: mirrors the kernel's bf16 MXU operands / f32 accumulation.
    xb = x.reshape(-1, n_embd).astype(jnp.bfloat16)
    w1b = params["w1"].astype(jnp.bfloat16)
    w2b = params["w2"].astype(jnp.bfloat16)
    h_ref = jnp.dot(xb, w1b, preferred_element_type=jnp.float32) + params["b1"]
    h_ref = 0.5 * h_ref * (1.0 + lax.erf(h_ref / jnp.sqrt(2.0)))
    y_ref = (jnp.dot(h_ref.astype(jnp.bfloat16), w2b,
                     preferred_element_type=jnp.float32)
             + params["b2"]).reshape(B, T, n_embd)
    assert jnp.allclose(y, y_ref, atol=1e-3, rtol=1e-3)

    # Reference 2: pure f32 math (loose tolerance covers bf16 rounding).
    h32 = x.reshape(-1, n_embd) @ params["w1"] + params["b1"]
    h32 = 0.5 * h32 * (1.0 + lax.erf(h32 / jnp.sqrt(2.0)))
    y32 = (h32 @ params["w2"] + params["b2"]).reshape(B, T, n_embd)
    assert jnp.allclose(y, y32, atol=5e-2, rtol=5e-2)

    print("KERNEL_OK")
</pallas_src>

<mosaic_0001>
module attributes {stable_mosaic.version = 11 : i64} {
  func.func @mlp_kernel(%arg0: i32, %arg1: i32, %arg2: memref<16x128xbf16, #tpu.memory_space<vmem>>, %arg3: memref<128x128xbf16, #tpu.memory_space<vmem>>, %arg4: memref<1x128xf32, #tpu.memory_space<vmem>>, %arg5: memref<128x128xbf16, #tpu.memory_space<vmem>>, %arg6: memref<1x128xf32, #tpu.memory_space<vmem>>, %arg7: memref<16x128xf32, #tpu.memory_space<vmem>>) attributes {dimension_semantics = [#tpu.dimension_semantics<parallel>, #tpu.dimension_semantics<arbitrary>], iteration_bounds = array<i64: 1, 1>, scalar_prefetch = 0 : i64, scratch_operands = 0 : i64, tpu.core_type = #tpu.core_type<tc>, window_params = [{transform_indices = @transform_0, window_bounds = array<i64: 16, 128>}, {transform_indices = @transform_1, window_bounds = array<i64: 128, 128>}, {transform_indices = @transform_2, window_bounds = array<i64: 1, 128>}, {transform_indices = @transform_3, window_bounds = array<i64: 128, 128>}, {pipeline_mode = #tpu.pipeline_mode<synchronous>, transform_indices = @transform_4, window_bounds = array<i64: 1, 128>}, {transform_indices = @transform_5, window_bounds = array<i64: 16, 128>}]} {
    %c0_i32 = arith.constant 0 : i32
    %0 = arith.cmpi eq, %arg1, %c0_i32 : i32
    %1 = arith.extui %0 : i1 to i32
    %c0_i32_0 = arith.constant 0 : i32
    %2 = arith.cmpi ne, %1, %c0_i32_0 : i32
    scf.if %2 {
      %c0_16 = arith.constant 0 : index
      %c0_17 = arith.constant 0 : index
      %23 = vector.load %arg6[%c0_16, %c0_17] : memref<1x128xf32, #tpu.memory_space<vmem>>, vector<1x128xf32>
      %24 = vector.shape_cast %23 : vector<1x128xf32> to vector<1x128xf32>
      %25 = vector.broadcast %24 : vector<1x128xf32> to vector<16x128xf32>
      %c0_18 = arith.constant 0 : index
      %c0_19 = arith.constant 0 : index
      %26 = vector.load %arg7[%c0_18, %c0_19] : memref<16x128xf32, #tpu.memory_space<vmem>>, vector<16x128xf32>
      tpu.vector_store %arg7[%c0_18, %c0_19], %25 {strides = array<i32>} : memref<16x128xf32, #tpu.memory_space<vmem>>, vector<16x128xf32>,
    } else {
    }
    %c0 = arith.constant 0 : index
    %c0_1 = arith.constant 0 : index
    %3 = vector.load %arg2[%c0, %c0_1] : memref<16x128xbf16, #tpu.memory_space<vmem>>, vector<16x128xbf16>
    %c0_2 = arith.constant 0 : index
    %c0_3 = arith.constant 0 : index
    %4 = vector.load %arg3[%c0_2, %c0_3] : memref<128x128xbf16, #tpu.memory_space<vmem>>, vector<128x128xbf16>
    %cst = arith.constant dense<0.000000e+00> : vector<16x128xf32>
    %5 = tpu.matmul %3, %4, %cst {dimension_numbers = #tpu.dot_dimension_numbers<[1], [0], [0], [1], [0, 0, 1, 1], [], []>} : vector<16x128xbf16>, vector<128x128xbf16>, vector<16x128xf32> -> vector<16x128xf32>
    %c0_4 = arith.constant 0 : index
    %c0_5 = arith.constant 0 : index
    %6 = vector.load %arg4[%c0_4, %c0_5] : memref<1x128xf32, #tpu.memory_space<vmem>>, vector<1x128xf32>
    %7 = vector.broadcast %6 : vector<1x128xf32> to vector<16x128xf32>
    %8 = arith.addf %5, %7 : vector<16x128xf32>
    %cst_6 = arith.constant 5.000000e-01 : f32
    %9 = vector.broadcast %cst_6 : f32 to vector<16x128xf32>
    %10 = arith.mulf %9, %8 : vector<16x128xf32>
    %cst_7 = arith.constant 0.707106769 : f32
    %11 = vector.broadcast %cst_7 : f32 to vector<16x128xf32>
    %12 = arith.mulf %8, %11 : vector<16x128xf32>
    %13 = math.erf %12 : vector<16x128xf32>
    %cst_8 = arith.constant 1.000000e+00 : f32
    %14 = vector.broadcast %cst_8 : f32 to vector<16x128xf32>
    %15 = arith.addf %14, %13 : vector<16x128xf32>
    %16 = arith.mulf %10, %15 : vector<16x128xf32>
    %c0_9 = arith.constant 0 : index
    %c0_10 = arith.constant 0 : index
    %17 = vector.load %arg7[%c0_9, %c0_10] : memref<16x128xf32, #tpu.memory_space<vmem>>, vector<16x128xf32>
    %18 = arith.truncf %16 : vector<16x128xf32> to vector<16x128xbf16>
    %c0_11 = arith.constant 0 : index
    %c0_12 = arith.constant 0 : index
    %19 = vector.load %arg5[%c0_11, %c0_12] : memref<128x128xbf16, #tpu.memory_space<vmem>>, vector<128x128xbf16>
    %cst_13 = arith.constant dense<0.000000e+00> : vector<16x128xf32>
    %20 = tpu.matmul %18, %19, %cst_13 {dimension_numbers = #tpu.dot_dimension_numbers<[1], [0], [0], [1], [0, 0, 1, 1], [], []>} : vector<16x128xbf16>, vector<128x128xbf16>, vector<16x128xf32> -> vector<16x128xf32>
    %21 = arith.addf %17, %20 : vector<16x128xf32>
    %c0_14 = arith.constant 0 : index
    %c0_15 = arith.constant 0 : index
    %22 = vector.load %arg7[%c0_14, %c0_15] : memref<16x128xf32, #tpu.memory_space<vmem>>, vector<16x128xf32>
    tpu.vector_store %arg7[%c0_14, %c0_15], %21 {strides = array<i32>} : memref<16x128xf32, #tpu.memory_space<vmem>>, vector<16x128xf32>,
    return
  }
  func.func @transform_0(%arg0: i32, %arg1: i32) -> (i32, i32) {
    %c0_i32 = arith.constant 0 : i32
    %c0_i32_0 = arith.constant 0 : i32
    return %arg0, %c0_i32 : i32, i32
  }
  func.func @transform_1(%arg0: i32, %arg1: i32) -> (i32, i32) {
    %c0_i32 = arith.constant 0 : i32
    %c0_i32_0 = arith.constant 0 : i32
    return %c0_i32, %arg1 : i32, i32
  }
  func.func @transform_2(%arg0: i32, %arg1: i32) -> (i32, i32) {
    %c0_i32 = arith.constant 0 : i32
    %c0_i32_0 = arith.constant 0 : i32
    return %c0_i32, %arg1 : i32, i32
  }
  func.func @transform_3(%arg0: i32, %arg1: i32) -> (i32, i32) {
    %c0_i32 = arith.constant 0 : i32
    %c0_i32_0 = arith.constant 0 : i32
    return %arg1, %c0_i32 : i32, i32
  }
  func.func @transform_4(%arg0: i32, %arg1: i32) -> (i32, i32) {
    %c0_i32 = arith.constant 0 : i32
    %c0_i32_0 = arith.constant 0 : i32
    %c0_i32_1 = arith.constant 0 : i32
    return %c0_i32, %c0_i32_0 : i32, i32
  }
  func.func @transform_5(%arg0: i32, %arg1: i32) -> (i32, i32) {
    %c0_i32 = arith.constant 0 : i32
    %c0_i32_0 = arith.constant 0 : i32
    return %arg0, %c0_i32 : i32, i32
  }
}

</mosaic_0001>

<llo_original>
// kernel: tpu_custom_call.1
$region0: #{tpu_custom_call.1}
  #allocation0 [shape = 'u32[]', space=smem, size = 0x4, offset = 0x4, fixed_abs, tag = 'smem constant byte address 0x4 - core index']
  #allocation1 [shape = 'u32[144,128]{1,0:T(1,128)}', space=vmem, size = 0x12000, scoped, tag = 'internal scratch']
  %s0 = inlined_call_operand.hbm [shape: bf16[16,128], index: 0, kind: input, shape index: {}]
  %s1 = inlined_call_operand.hbm [shape: bf16[128,128], index: 1, kind: input, shape index: {}]
  %s2 = inlined_call_operand.vmem [shape: f32[1,128], index: 2, kind: input, shape index: {}]
  %s3 = inlined_call_operand.hbm [shape: bf16[128,128], index: 3, kind: input, shape index: {}]
  %s4 = inlined_call_operand.vmem [shape: f32[1,128], index: 4, kind: input, shape index: {}]
  %s5 = inlined_call_operand.hbm [shape: f32[16,128], index: 5, kind: output, shape index: {}]
  %s6 = sld [smem:[#allocation0]]
  $region46: #{tpu_custom_call.1} parent=0
    _
  %s8 = ssub.s32 1, %s6
  %s9 = scalar_select 0, %s8, %s6
  $region1: #{tpu_custom_call.1} parent=0
    #allocation2 [shape = 'u8[4096]{0}', space=vmem, size = 0x1000, scoped, tag = 'input window, operand 0, single buffered']
    #allocation3 [shape = 's32[1]{0}', space=sflag, size = 0x4, scoped, tag = 'scoped memory for tpu_custom_call.1']
    #allocation4 [shape = 's32[1]{0}', space=sflag, size = 0x4, scoped, tag = 'scoped memory for tpu_custom_call.1']
    #allocation5 [shape = 'u8[32768]{0}', space=vmem, size = 0x8000, scoped, tag = 'input window, operand 1, single buffered']
    #allocation6 [shape = 's32[1]{0}', space=sflag, size = 0x4, scoped, tag = 'scoped memory for tpu_custom_call.1']
    #allocation7 [shape = 'u8[32768]{0}', space=vmem, size = 0x8000, scoped, tag = 'input window, operand 3, single buffered']
    #allocation8 [shape = 'u8[8192]{0}', space=vmem, size = 0x2000, scoped, tag = 'output window, operand 0, single buffered']
    %10 = vsyncpa [#allocation3], 0
    %11 = vsyncpa [#allocation6], 0
    %12 = vsyncpa [#allocation4], 0
    // Predicated region
    $region2: #{tpu_custom_call.1} parent=1 // pred_check
      _
    $region3: #{tpu_custom_call.1} parent=1 // pred_check_branch
      %14 = sbr.rel (0) target = $region5
    $region4: #{tpu_custom_call.1} parent=1 // pred_region
      %s16 = ssub.s32 128, 128
      %17 = vsyncadd [#allocation3], %s16
      %s18 = sshll.u32 [#allocation2], 4
      %s19 = int_to_ptr.vmem [resolvable:$true] %s18
      %24 = dma.hbm_to_vmem [thread:$0]  %s0, 128, %s19, [#allocation3], 64, 64, 4
    $region5: #{tpu_custom_call.1} parent=1 // pred_fallthru
      _
    // Predicated region
    $region6: #{tpu_custom_call.1} parent=1 // pred_check
      _
    $region7: #{tpu_custom_call.1} parent=1 // pred_check_branch
      %26 = sbr.rel (0) target = $region9
    $region8: #{tpu_custom_call.1} parent=1 // pred_region
      %s28 = ssub.s32 1024, 1024
      %29 = vsyncadd [#allocation6], %s28
      %s30 = sshll.u32 [#allocation5], 4
      %s31 = int_to_ptr.vmem [resolvable:$true] %s30
      %36 = dma.hbm_to_vmem [thread:$0]  %s1, 1024, %s31, [#allocation6], 64, 64, 4
    $region9: #{tpu_custom_call.1} parent=1 // pred_fallthru
      _
    // Predicated region
    $region10: #{tpu_custom_call.1} parent=1 // pred_check
      _
    $region11: #{tpu_custom_call.1} parent=1 // pred_check_branch
      %38 = sbr.rel (0) target = $region13
    $region12: #{tpu_custom_call.1} parent=1 // pred_region
      _
    $region13: #{tpu_custom_call.1} parent=1 // pred_fallthru
      _
    // Predicated region
    $region14: #{tpu_custom_call.1} parent=1 // pred_check
      _
    $region15: #{tpu_custom_call.1} parent=1 // pred_check_branch
      %40 = sbr.rel (0) target = $region17
    $region16: #{tpu_custom_call.1} parent=1 // pred_region
      %s42 = ssub.s32 1024, 1024
      %43 = vsyncadd [#allocation6], %s42
      %s44 = sshll.u32 [#allocation7], 4
      %s45 = int_to_ptr.vmem [resolvable:$true] %s44
      %50 = dma.hbm_to_vmem [thread:$0]  %s3, 1024, %s45, [#allocation6], 64, 64, 4
    $region17: #{tpu_custom_call.1} parent=1 // pred_fallthru
      _
    // Predicated region
    $region18: #{tpu_custom_call.1} parent=1 // pred_check
      _
    $region19: #{tpu_custom_call.1} parent=1 // pred_check_branch
      %52 = sbr.rel (0) target = $region21
    $region20: #{tpu_custom_call.1} parent=1 // pred_region
      _
    $region21: #{tpu_custom_call.1} parent=1 // pred_fallthru
      _
    // Predicated region
    $region22: #{tpu_custom_call.1} parent=1 // pred_check
      _
    $region23: #{tpu_custom_call.1} parent=1 // pred_check_branch
      %54 = sbr.rel (0) target = $region25
    $region24: #{tpu_custom_call.1} parent=1 // pred_region
      %55 = dma.done [#allocation3], 128
    $region25: #{tpu_custom_call.1} parent=1 // pred_fallthru
      _
    // Predicated region
    $region26: #{tpu_custom_call.1} parent=1 // pred_check
      _
    $region27: #{tpu_custom_call.1} parent=1 // pred_check_branch
      %57 = sbr.rel (0) target = $region29
    $region28: #{tpu_custom_call.1} parent=1 // pred_region
      %58 = dma.done [#allocation6], 1024
    $region29: #{tpu_custom_call.1} parent=1 // pred_fallthru
      _
    // Predicated region
    $region30: #{tpu_custom_call.1} parent=1 // pred_check
      _
    $region31: #{tpu_custom_call.1} parent=1 // pred_check_branch
      %60 = sbr.rel (0) target = $region33
    $region32: #{tpu_custom_call.1} parent=1 // pred_region
      %61 = dma.done [#allocation6], 1024
    $region33: #{tpu_custom_call.1} parent=1 // pred_fallthru
      _
    %p63 = scmp.eq.s32.totalorder 0, 0
    // Predicated region
    $region34: #{tpu_custom_call.1} parent=1 // pred_check
      %p64 = pneg %p63
    $region35: #{tpu_custom_call.1} parent=1 // pred_check_branch
      %66 = sbr.rel (%p64) target = $region37
    $region36: #{tpu_custom_call.1} parent=1 // pred_region
      %v67 = vld [vmem:[%s4] sm:$0x1]
      %v69 = vlaneseq
      %v70 = vshrl.u32 %v69, 7
      %v71 = vsub.s32 0, %v70
      %v72 = vrot.slane %v67, %v71
      %74 = vst [vmem:[#allocation8] sm:$0xff] %v72
      %75 = vst [vmem:[#allocation8 + $0x8] sm:$0xff] %v72
    $region37: #{tpu_custom_call.1} parent=1 // pred_fallthru
      _
    %v76 = vld [vmem:[#allocation2] sm:$0xf]
    %v77 = vld [vmem:[#allocation2 + $0x4] sm:$0xf]
    %v78 = vld [vmem:[#allocation5] sm:$0xf]
    %v79 = vld [vmem:[#allocation5 + $0x4] sm:$0xf]
    %v80 = vld [vmem:[#allocation5 + $0x8] sm:$0xf]
    %v81 = vld [vmem:[#allocation5 + $0xc] sm:$0xf]
    %v82 = vld [vmem:[#allocation5 + $0x10] sm:$0xf]
    %v83 = vld [vmem:[#allocation5 + $0x14] sm:$0xf]
    %v84 = vld [vmem:[#allocation5 + $0x18] sm:$0xf]
    %v85 = vld [vmem:[#allocation5 + $0x1c] sm:$0xf]
    %v86 = vld [vmem:[#allocation5 + $0x20] sm:$0xf]
    %v87 = vld [vmem:[#allocation5 + $0x24] sm:$0xf]
    %v88 = vld [vmem:[#allocation5 + $0x28] sm:$0xf]
    %v89 = vld [vmem:[#allocation5 + $0x2c] sm:$0xf]
    %v90 = vld [vmem:[#allocation5 + $0x30] sm:$0xf]
    %v91 = vld [vmem:[#allocation5 + $0x34] sm:$0xf]
    %v92 = vld [vmem:[#allocation5 + $0x38] sm:$0xf]
    %v93 = vld [vmem:[#allocation5 + $0x3c] sm:$0xf]
    %v94 = vld [vmem:[%s2] sm:$0x1]
    %v96 = vlaneseq
    %v97 = vshrl.u32 %v96, 7
    %v98 = vsub.s32 0, %v97
    %v99 = vrot.slane %v94, %v98
    %v103 = vunpack.c.l.b16 %v76
    %v104 = vunpack.c.l.b16 %v77
    %v105 = vpack.c.b16 %v104, %v103
    %v123 = vunpack.c.l.b16 %v78
    %v124 = vunpack.c.l.b16 %v79
    %v125 = vunpack.c.l.b16 %v80
    %v126 = vunpack.c.l.b16 %v81
    %v127 = vunpack.c.l.b16 %v82
    %v128 = vunpack.c.l.b16 %v83
    %v129 = vunpack.c.l.b16 %v84
    %v130 = vunpack.c.l.b16 %v85
    %v131 = vunpack.c.l.b16 %v86
    %v132 = vunpack.c.l.b16 %v87
    %v133 = vunpack.c.l.b16 %v88
    %v134 = vunpack.c.l.b16 %v89
    %v135 = vunpack.c.l.b16 %v90
    %v136 = vunpack.c.l.b16 %v91
    %v137 = vunpack.c.l.b16 %v92
    %v138 = vunpack.c.l.b16 %v93
    %v139 = vpack.c.b16 %v124, %v123
    %v140 = vpack.c.b16 %v126, %v125
    %v141 = vpack.c.b16 %v128, %v127
    %v142 = vpack.c.b16 %v130, %v129
    %v143 = vpack.c.b16 %v132, %v131
    %v144 = vpack.c.b16 %v134, %v133
    %v145 = vpack.c.b16 %v136, %v135
    %v146 = vpack.c.b16 %v138, %v137
    %155 = vmatprep.subr.bf16.mxu0 0
    %156 = vmatpush1.bf16.msra.mxu0 %v139
    %157 = vmatprep.subr.bf16.mxu0 0
    %158 = vmatpush1.bf16.msra.mxu0 %v140
    %159 = vmatprep.subr.bf16.mxu0 0
    %160 = vmatpush1.bf16.msra.mxu0 %v141
    %161 = vmatprep.subr.bf16.mxu0 0
    %162 = vmatpush1.bf16.msra.mxu0 %v142
    %163 = vmatprep.subr.bf16.mxu0 0
    %164 = vmatpush1.bf16.msra.mxu0 %v143
    %165 = vmatprep.subr.bf16.mxu0 0
    %166 = vmatpush1.bf16.msra.mxu0 %v144
    %167 = vmatprep.subr.bf16.mxu0 0
    %168 = vmatpush1.bf16.msra.mxu0 %v145
    %169 = vmatprep.subr.bf16.mxu0 0
    %170 = vmatpush1.bf16.msra.mxu0 %v146
    %171 = vmatprep.subr.bf16.mxu0 0
    %172 = vmatpush1.bf16.msra.mxu0 0
    %173 = vmatprep.subr.bf16.mxu0 0
    %174 = vmatpush1.bf16.msra.mxu0 0
    %175 = vmatprep.subr.bf16.mxu0 0
    %176 = vmatpush1.bf16.msra.mxu0 0
    %177 = vmatprep.subr.bf16.mxu0 0
    %178 = vmatpush1.bf16.msra.mxu0 0
    %179 = vmatprep.subr.bf16.mxu0 0
    %180 = vmatpush1.bf16.msra.mxu0 0
    %181 = vmatprep.subr.bf16.mxu0 0
    %182 = vmatpush1.bf16.msra.mxu0 0
    %183 = vmatprep.subr.bf16.mxu0 0
    %184 = vmatpush1.bf16.msra.mxu0 0
    %185 = vmatprep.subr.bf16.mxu0 0
    %186 = vmatpush1.bf16.msra.mxu0 0
    %187 = vmatprep.mubr.bf16.mxu0 0
    %188 = vmatmul.mubr.bf16.gmra.mrb[0].mxu0 %v105
    %v189 = vpop.f32.mrb[0].mxu0
    %v190 = vadd.f32 %v99, %v189
    %v191 = vpop.f32.mrb[0].mxu0
    %v192 = vpop.f32.mrb[0].mxu0
    %v193 = vadd.f32 %v99, %v192
    %v194 = vpop.f32.mrb[0].mxu0
    %195 = vdwg.mxu0
    %v196 = vmul.f32 %v190, 0.5
    %v197 = vmul.f32 %v193, 0.5
    %v198 = vmul.f32 %v190, 0.70710677
    %v199 = vmul.f32 %v193, 0.70710677
    %v200 = verf.f32.pop %v198
    %v201 = verf.f32.pop %v199
    %v202 = vadd.f32 %v200, 1.0
    %v203 = vadd.f32 %v201, 1.0
    %v204 = vmul.f32 %v196, %v202
    %v205 = vmul.f32 %v197, %v203
    %v206 = vld [vmem:[#allocation8] sm:$0xff]
    %v207 = vld [vmem:[#allocation8 + $0x8] sm:$0xff]
    %v208 = vpack.c.bf16 %v205, %v204
    %v209 = vld [vmem:[#allocation7] sm:$0xf]
    %v210 = vld [vmem:[#allocation7 + $0x4] sm:$0xf]
    %v211 = vld [vmem:[#allocation7 + $0x8] sm:$0xf]
    %v212 = vld [vmem:[#allocation7 + $0xc] sm:$0xf]
    %v213 = vld [vmem:[#allocation7 + $0x10] sm:$0xf]
    %v214 = vld [vmem:[#allocation7 + $0x14] sm:$0xf]
    %v215 = vld [vmem:[#allocation7 + $0x18] sm:$0xf]
    %v216 = vld [vmem:[#allocation7 + $0x1c] sm:$0xf]
    %v217 = vld [vmem:[#allocation7 + $0x20] sm:$0xf]
    %v218 = vld [vmem:[#allocation7 + $0x24] sm:$0xf]
    %v219 = vld [vmem:[#allocation7 + $0x28] sm:$0xf]
    %v220 = vld [vmem:[#allocation7 + $0x2c] sm:$0xf]
    %v221 = vld [vmem:[#allocation7 + $0x30] sm:$0xf]
    %v222 = vld [vmem:[#allocation7 + $0x34] sm:$0xf]
    %v223 = vld [vmem:[#allocation7 + $0x38] sm:$0xf]
    %v224 = vld [vmem:[#allocation7 + $0x3c] sm:$0xf]
    %v241 = vunpack.c.l.b16 %v209
    %v242 = vunpack.c.l.b16 %v210
    %v243 = vunpack.c.l.b16 %v211
    %v244 = vunpack.c.l.b16 %v212
    %v245 = vunpack.c.l.b16 %v213
    %v246 = vunpack.c.l.b16 %v214
    %v247 = vunpack.c.l.b16 %v215
    %v248 = vunpack.c.l.b16 %v216
    %v249 = vunpack.c.l.b16 %v217
    %v250 = vunpack.c.l.b16 %v218
    %v251 = vunpack.c.l.b16 %v219
    %v252 = vunpack.c.l.b16 %v220
    %v253 = vunpack.c.l.b16 %v221
    %v254 = vunpack.c.l.b16 %v222
    %v255 = vunpack.c.l.b16 %v223
    %v256 = vunpack.c.l.b16 %v224
    %v257 = vpack.c.b16 %v242, %v241
    %v258 = vpack.c.b16 %v244, %v243
    %v259 = vpack.c.b16 %v246, %v245
    %v260 = vpack.c.b16 %v248, %v247
    %v261 = vpack.c.b16 %v250, %v249
    %v262 = vpack.c.b16 %v252, %v251
    %v263 = vpack.c.b16 %v254, %v253
    %v264 = vpack.c.b16 %v256, %v255
    %273 = vmatprep.subr.bf16.mxu0 0
    %274 = vmatpush1.bf16.msra.mxu0 %v257
    %275 = vmatprep.subr.bf16.mxu0 0
    %276 = vmatpush1.bf16.msra.mxu0 %v258
    %277 = vmatprep.subr.bf16.mxu0 0
    %278 = vmatpush1.bf16.msra.mxu0 %v259
    %279 = vmatprep.subr.bf16.mxu0 0
    %280 = vmatpush1.bf16.msra.mxu0 %v260
    %281 = vmatprep.subr.bf16.mxu0 0
    %282 = vmatpush1.bf16.msra.mxu0 %v261
    %283 = vmatprep.subr.bf16.mxu0 0
    %284 = vmatpush1.bf16.msra.mxu0 %v262
    %285 = vmatprep.subr.bf16.mxu0 0
    %286 = vmatpush1.bf16.msra.mxu0 %v263
    %287 = vmatprep.subr.bf16.mxu0 0
    %288 = vmatpush1.bf16.msra.mxu0 %v264
    %289 = vmatprep.subr.bf16.mxu0 0
    %290 = vmatpush1.bf16.msra.mxu0 0
    %291 = vmatprep.subr.bf16.mxu0 0
    %292 = vmatpush1.bf16.msra.mxu0 0
    %293 = vmatprep.subr.bf16.mxu0 0
    %294 = vmatpush1.bf16.msra.mxu0 0
    %295 = vmatprep.subr.bf16.mxu0 0
    %296 = vmatpush1.bf16.msra.mxu0 0
    %297 = vmatprep.subr.bf16.mxu0 0
    %298 = vmatpush1.bf16.msra.mxu0 0
    %299 = vmatprep.subr.bf16.mxu0 0
    %300 = vmatpush1.bf16.msra.mxu0 0
    %301 = vmatprep.subr.bf16.mxu0 0
    %302 = vmatpush1.bf16.msra.mxu0 0
    %303 = vmatprep.subr.bf16.mxu0 0
    %304 = vmatpush1.bf16.msra.mxu0 0
    %305 = vmatprep.mubr.bf16.mxu0 0
    %306 = vmatmul.mubr.bf16.gmra.mrb[0].mxu0 %v208
    %v307 = vpop.f32.mrb[0].mxu0
    %v308 = vadd.f32 0.0, %v307
    %v309 = vpop.f32.mrb[0].mxu0
    %v310 = vpop.f32.mrb[0].mxu0
    %v311 = vadd.f32 0.0, %v310
    %v312 = vpop.f32.mrb[0].mxu0
    %313 = vdwg.mxu0
    %v314 = vadd.f32 %v206, %v308
    %v315 = vadd.f32 %v207, %v311
    %316 = vst [vmem:[#allocation8] sm:$0xff] %v314
    %317 = vst [vmem:[#allocation8 + $0x8] sm:$0xff] %v315
    // Predicated region
    $region38: #{tpu_custom_call.1} parent=1 // pred_check
      _
    $region39: #{tpu_custom_call.1} parent=1 // pred_check_branch
      %319 = sbr.rel (0) target = $region41
    $region40: #{tpu_custom_call.1} parent=1 // pred_region
      %s321 = ssub.s32 256, 256
      %322 = vsyncadd [#allocation4], %s321
      %s323 = sshll.u32 [#allocation8], 4
      %s324 = int_to_ptr.vmem [resolvable:$true] %s323
      %329 = dma.vmem_to_hbm [thread:$0]  %s324, 256, %s5, [#allocation4], 128, 128, 8
    $region41: #{tpu_custom_call.1} parent=1 // pred_fallthru
      _
    // Predicated region
    $region42: #{tpu_custom_call.1} parent=1 // pred_check
      _
    $region43: #{tpu_custom_call.1} parent=1 // pred_check_branch
      %331 = sbr.rel (0) target = $region45
    $region44: #{tpu_custom_call.1} parent=1 // pred_region
      %332 = dma.done [#allocation4], 256
    $region45: #{tpu_custom_call.1} parent=1 // pred_fallthru
      _
    %333 = vsyncpa [#allocation3], 1
    %334 = vsyncpa [#allocation6], 1
    %335 = vsyncpa [#allocation4], 1

</llo_original>
